<compile_context>
chip_gen: v7x
topology: tpu7x:2x2x1
jax: 0.10.0
libtpu: 0.0.40
codegen_flags: <defaults>
</compile_context>

<pallas_src>
import functools

import jax
import jax.numpy as jnp
from jax.experimental import pallas as pl
from jax.experimental.pallas import tpu as pltpu

LANE = 128      # vreg lane width: pad feature dims to a multiple of this
                # (256-wide tiles would fill the v6e/v7x MXU even better for
                #  layers wider than 128; all layers here are <= 32)
SUBLANE = 8     # f32 sublane multiple for the batch dim


def _round_up(x, m):
    return (x + m - 1) // m * m


# ---------------------------------------------------------------------------
# Fused kernel: one grid step pushes one batch tile through the whole MLP.
# ---------------------------------------------------------------------------
def _fnn_fused_kernel(x_ref, w_ref, b_ref, o_ref, *, n_layers, negative_slope):
    """x_ref: (TB, Dp) input tile
       w_ref: (L, Dp, Dp) stacked zero-padded weights (compute dtype)
       b_ref: (L, 1, Dp)  stacked zero-padded biases (f32)
       o_ref: (TB, Dp)    f32 output tile
    """
    h = x_ref[...].astype(w_ref.dtype)          # compute dtype for the MXU
    for i in range(n_layers):                   # static unroll: few small layers
        # MXU matmul with f32 accumulation, bias + activation in f32.
        y = jnp.dot(h, w_ref[i], preferred_element_type=jnp.float32) + b_ref[i]
        if i < n_layers - 1:
            y = jnp.where(y >= 0, y, negative_slope * y)     # LeakyReLU(0.01)
            h = y.astype(w_ref.dtype)
        else:
            h = y
    o_ref[...] = h.astype(o_ref.dtype)


# ---------------------------------------------------------------------------
# Parameter init (matches torch.nn.Linear default U[-1/sqrt(fan_in), +...])
# Weights stored as (fan_in, fan_out) so the kernel does x @ W directly.
# ---------------------------------------------------------------------------
def init_fnn_params(key, in_dim, out_dim, nn_arch):
    dims = [in_dim] + list(nn_arch) + [out_dim]
    params = []
    for i in range(len(dims) - 1):
        fan_in, fan_out = dims[i], dims[i + 1]
        key, kw, kb = jax.random.split(key, 3)
        bound = 1.0 / (fan_in ** 0.5)
        w = jax.random.uniform(kw, (fan_in, fan_out), jnp.float32, -bound, bound)
        b = jax.random.uniform(kb, (fan_out,), jnp.float32, -bound, bound)
        params.append((w, b))
    return params


def pack_fnn_params(params, compute_dtype=jnp.float32):
    """Zero-pad every layer to a common lane-dense (Dp, Dp) tile and stack.

    Padded rows/columns are zero, so padded lanes carry exact zeros through
    bias-add and LeakyReLU and never leak into the real output columns.
    """
    dp = max(max(_round_up(w.shape[0], LANE), _round_up(w.shape[1], LANE))
             for w, _ in params)
    ws, bs = [], []
    for w, b in params:
        wp = jnp.zeros((dp, dp), jnp.float32).at[:w.shape[0], :w.shape[1]].set(w)
        bp = jnp.zeros((1, dp), jnp.float32).at[0, :b.shape[0]].set(b)
        ws.append(wp)
        bs.append(bp)
    W = jnp.stack(ws).astype(compute_dtype)   # (L, Dp, Dp)  compute dtype
    B = jnp.stack(bs)                         # (L, 1, Dp)   f32 (bias stays f32)
    in_dim = params[0][0].shape[0]
    out_dim = params[-1][0].shape[1]
    return W, B, in_dim, out_dim


# ---------------------------------------------------------------------------
# Forward: single fused pallas_call, batch tiled on a "parallel" grid axis.
# ---------------------------------------------------------------------------
def fnn_forward(packed, x, *, tile_b=128, negative_slope=0.01):
    W, Bias, in_dim, out_dim = packed
    L, dp, _ = W.shape
    batch = x.shape[0]

    # Batch padded to the sublane multiple; tiled when it exceeds tile_b.
    # (tile_b=128 keeps per-tile VMEM tiny; for very large Dp re-derive against
    #  v7x's 64 MiB VMEM and set vmem_limit_bytes explicitly.)
    b_pad = _round_up(batch, SUBLANE)
    if b_pad <= tile_b:
        tile_b = b_pad
    else:
        b_pad = _round_up(b_pad, tile_b)

    x_pad = jnp.zeros((b_pad, dp), x.dtype).at[:batch, :in_dim].set(x)

    kernel = functools.partial(_fnn_fused_kernel, n_layers=L,
                               negative_slope=negative_slope)
    out_pad = pl.pallas_call(
        kernel,
        out_shape=jax.ShapeDtypeStruct((b_pad, dp), jnp.float32),
        grid=(b_pad // tile_b,),
        in_specs=[
            # activations stream per batch tile
            pl.BlockSpec((tile_b, dp), lambda i: (i, 0)),
            # weights/biases: constant index_map across the batch axis
            # -> VMEM-resident, not re-DMA'd per batch tile
            pl.BlockSpec((L, dp, dp), lambda i: (0, 0, 0)),
            pl.BlockSpec((L, 1, dp), lambda i: (0, 0, 0)),
        ],
        out_specs=pl.BlockSpec((tile_b, dp), lambda i: (i, 0)),
        compiler_params=pltpu.CompilerParams(
            dimension_semantics=("parallel",),   # megacore sharding on v7x
        ),
    )(x_pad, W, Bias)

    return out_pad[:batch, :out_dim]


def fnn_forward_ref(params, x, negative_slope=0.01):
    """Pure-JAX f32 reference (mirrors the PyTorch module)."""
    n = len(params)
    for i, (w, b) in enumerate(params):
        x = x @ w + b
        if i < n - 1:
            x = jnp.where(x >= 0, x, negative_slope * x)
    return x


if __name__ == "__main__":
    # FNN(in_dim=16, out_dim=8, nn_arch=[32, 32]) -- satisfies the module's
    # assert (nn_arch[0] != in_dim and nn_arch[-1] != out_dim).
    # TODO(synk): dropout (only active with `dropouts` kwarg, no-op in eval) and
    # batch-norm (off by default) are not part of the default forward path.
    in_dim, out_dim = 16, 8
    nn_arch = [32, 32]
    batch = 8

    key = jax.random.PRNGKey(0)
    key, kx = jax.random.split(key)
    x = jax.random.normal(kx, (batch, in_dim), jnp.float32)
    params = init_fnn_params(key, in_dim, out_dim, nn_arch)

    ref = fnn_forward_ref(params, x)

    # f32 compute path: exact match to the reference.
    packed_f32 = pack_fnn_params(params, compute_dtype=jnp.float32)
    out_f32 = jax.block_until_ready(fnn_forward(packed_f32, x))
    assert out_f32.shape == (batch, out_dim)
    assert jnp.allclose(out_f32, ref, atol=1e-5, rtol=1e-5)

    # bf16 MXU path (f32 accumulation / bias / activation epilogue).
    packed_bf16 = pack_fnn_params(params, compute_dtype=jnp.bfloat16)
    out_bf16 = jax.block_until_ready(fnn_forward(packed_bf16, x))
    assert out_bf16.shape == (batch, out_dim)
    assert jnp.allclose(out_bf16, ref, atol=5e-2, rtol=5e-2)

    print("KERNEL_OK")
</pallas_src>

<mosaic_0001>
module attributes {stable_mosaic.version = 11 : i64} {
  func.func @_fnn_fused_kernel(%arg0: i32, %arg1: memref<8x128xf32, #tpu.memory_space<vmem>>, %arg2: memref<3x128x128xf32, #tpu.memory_space<vmem>>, %arg3: memref<3x1x128xf32, #tpu.memory_space<vmem>>, %arg4: memref<8x128xf32, #tpu.memory_space<vmem>>) attributes {dimension_semantics = [#tpu.dimension_semantics<parallel>], iteration_bounds = array<i64: 1>, scalar_prefetch = 0 : i64, scratch_operands = 0 : i64, tpu.core_type = #tpu.core_type<tc>, window_params = [{transform_indices = @transform_0, window_bounds = array<i64: 8, 128>}, {pipeline_mode = #tpu.pipeline_mode<synchronous>, transform_indices = @transform_1, window_bounds = array<i64: 3, 128, 128>}, {pipeline_mode = #tpu.pipeline_mode<synchronous>, transform_indices = @transform_2, window_bounds = array<i64: 3, 1, 128>}, {transform_indices = @transform_3, window_bounds = array<i64: 8, 128>}]} {
    %c0 = arith.constant 0 : index
    %c0_0 = arith.constant 0 : index
    %0 = vector.load %arg1[%c0, %c0_0] : memref<8x128xf32, #tpu.memory_space<vmem>>, vector<8x128xf32>
    %c0_1 = arith.constant 0 : index
    %c0_2 = arith.constant 0 : index
    %c0_3 = arith.constant 0 : index
    %1 = vector.load %arg2[%c0_1, %c0_2, %c0_3] : memref<3x128x128xf32, #tpu.memory_space<vmem>>, vector<1x128x128xf32>
    %2 = vector.shape_cast %1 : vector<1x128x128xf32> to vector<128x128xf32>
    %cst = arith.constant dense<0.000000e+00> : vector<8x128xf32>
    %3 = tpu.matmul %0, %2, %cst {dimension_numbers = #tpu.dot_dimension_numbers<[1], [0], [0], [1], [0, 0, 1, 1], [], []>} : vector<8x128xf32>, vector<128x128xf32>, vector<8x128xf32> -> vector<8x128xf32>
    %c0_4 = arith.constant 0 : index
    %c0_5 = arith.constant 0 : index
    %c0_6 = arith.constant 0 : index
    %4 = vector.load %arg3[%c0_4, %c0_5, %c0_6] : memref<3x1x128xf32, #tpu.memory_space<vmem>>, vector<1x1x128xf32>
    %5 = vector.shape_cast %4 : vector<1x1x128xf32> to vector<1x128xf32>
    %6 = vector.broadcast %5 : vector<1x128xf32> to vector<8x128xf32>
    %7 = arith.addf %3, %6 : vector<8x128xf32>
    %cst_7 = arith.constant 0.000000e+00 : f32
    %8 = vector.broadcast %cst_7 : f32 to vector<8x128xf32>
    %9 = arith.cmpf oge, %7, %8 : vector<8x128xf32>
    %cst_8 = arith.constant 0.00999999977 : f32
    %10 = vector.broadcast %cst_8 : f32 to vector<8x128xf32>
    %11 = arith.mulf %10, %7 : vector<8x128xf32>
    %12 = arith.select %9, %7, %11 : vector<8x128xi1>, vector<8x128xf32>
    %c1 = arith.constant 1 : index
    %c0_9 = arith.constant 0 : index
    %c0_10 = arith.constant 0 : index
    %13 = vector.load %arg2[%c1, %c0_9, %c0_10] : memref<3x128x128xf32, #tpu.memory_space<vmem>>, vector<1x128x128xf32>
    %14 = vector.shape_cast %13 : vector<1x128x128xf32> to vector<128x128xf32>
    %cst_11 = arith.constant dense<0.000000e+00> : vector<8x128xf32>
    %15 = tpu.matmul %12, %14, %cst_11 {dimension_numbers = #tpu.dot_dimension_numbers<[1], [0], [0], [1], [0, 0, 1, 1], [], []>} : vector<8x128xf32>, vector<128x128xf32>, vector<8x128xf32> -> vector<8x128xf32>
    %c1_12 = arith.constant 1 : index
    %c0_13 = arith.constant 0 : index
    %c0_14 = arith.constant 0 : index
    %16 = vector.load %arg3[%c1_12, %c0_13, %c0_14] : memref<3x1x128xf32, #tpu.memory_space<vmem>>, vector<1x1x128xf32>
    %17 = vector.shape_cast %16 : vector<1x1x128xf32> to vector<1x128xf32>
    %18 = vector.broadcast %17 : vector<1x128xf32> to vector<8x128xf32>
    %19 = arith.addf %15, %18 : vector<8x128xf32>
    %cst_15 = arith.constant 0.000000e+00 : f32
    %20 = vector.broadcast %cst_15 : f32 to vector<8x128xf32>
    %21 = arith.cmpf oge, %19, %20 : vector<8x128xf32>
    %cst_16 = arith.constant 0.00999999977 : f32
    %22 = vector.broadcast %cst_16 : f32 to vector<8x128xf32>
    %23 = arith.mulf %22, %19 : vector<8x128xf32>
    %24 = arith.select %21, %19, %23 : vector<8x128xi1>, vector<8x128xf32>
    %c2 = arith.constant 2 : index
    %c0_17 = arith.constant 0 : index
    %c0_18 = arith.constant 0 : index
    %25 = vector.load %arg2[%c2, %c0_17, %c0_18] : memref<3x128x128xf32, #tpu.memory_space<vmem>>, vector<1x128x128xf32>
    %26 = vector.shape_cast %25 : vector<1x128x128xf32> to vector<128x128xf32>
    %cst_19 = arith.constant dense<0.000000e+00> : vector<8x128xf32>
    %27 = tpu.matmul %24, %26, %cst_19 {dimension_numbers = #tpu.dot_dimension_numbers<[1], [0], [0], [1], [0, 0, 1, 1], [], []>} : vector<8x128xf32>, vector<128x128xf32>, vector<8x128xf32> -> vector<8x128xf32>
    %c2_20 = arith.constant 2 : index
    %c0_21 = arith.constant 0 : index
    %c0_22 = arith.constant 0 : index
    %28 = vector.load %arg3[%c2_20, %c0_21, %c0_22] : memref<3x1x128xf32, #tpu.memory_space<vmem>>, vector<1x1x128xf32>
    %29 = vector.shape_cast %28 : vector<1x1x128xf32> to vector<1x128xf32>
    %30 = vector.broadcast %29 : vector<1x128xf32> to vector<8x128xf32>
    %31 = arith.addf %27, %30 : vector<8x128xf32>
    %c0_23 = arith.constant 0 : index
    %c0_24 = arith.constant 0 : index
    %32 = vector.load %arg4[%c0_23, %c0_24] : memref<8x128xf32, #tpu.memory_space<vmem>>, vector<8x128xf32>
    tpu.vector_store %arg4[%c0_23, %c0_24], %31 {strides = array<i32>} : memref<8x128xf32, #tpu.memory_space<vmem>>, vector<8x128xf32>,
    return
  }
  func.func @transform_0(%arg0: i32) -> (i32, i32) {
    %c0_i32 = arith.constant 0 : i32
    %c0_i32_0 = arith.constant 0 : i32
    return %arg0, %c0_i32 : i32, i32
  }
  func.func @transform_1(%arg0: i32) -> (i32, i32, i32) {
    %c0_i32 = arith.constant 0 : i32
    %c0_i32_0 = arith.constant 0 : i32
    %c0_i32_1 = arith.constant 0 : i32
    %c0_i32_2 = arith.constant 0 : i32
    return %c0_i32, %c0_i32_0, %c0_i32_1 : i32, i32, i32
  }
  func.func @transform_2(%arg0: i32) -> (i32, i32, i32) {
    %c0_i32 = arith.constant 0 : i32
    %c0_i32_0 = arith.constant 0 : i32
    %c0_i32_1 = arith.constant 0 : i32
    %c0_i32_2 = arith.constant 0 : i32
    return %c0_i32, %c0_i32_0, %c0_i32_1 : i32, i32, i32
  }
  func.func @transform_3(%arg0: i32) -> (i32, i32) {
    %c0_i32 = arith.constant 0 : i32
    %c0_i32_0 = arith.constant 0 : i32
    return %arg0, %c0_i32 : i32, i32
  }
}

</mosaic_0001>

<llo_original>
// kernel: tpu_custom_call.1
$region0: #{tpu_custom_call.1}
  #allocation0 [shape = 'u32[]', space=smem, size = 0x4, offset = 0x4, fixed_abs, tag = 'smem constant byte address 0x4 - core index']
  #allocation1 [shape = 'u32[144,128]{1,0:T(1,128)}', space=vmem, size = 0x12000, scoped, tag = 'internal scratch']
  %s0 = inlined_call_operand.hbm [shape: f32[8,128], index: 0, kind: input, shape index: {}]
  %s1 = inlined_call_operand.hbm [shape: f32[3,128,128], index: 1, kind: input, shape index: {}]
  %s2 = inlined_call_operand.vmem [shape: f32[3,1,128], index: 2, kind: input, shape index: {}]
  %s3 = inlined_call_operand.hbm [shape: f32[8,128], index: 3, kind: output, shape index: {}]
  %s4 = sld [smem:[#allocation0]]
  $region30: #{tpu_custom_call.1} parent=0
    _
  %s6 = ssub.s32 1, %s4
  %s7 = scalar_select 0, %s6, %s4
  $region1: #{tpu_custom_call.1} parent=0
    #allocation2 [shape = 'u8[4096]{0}', space=vmem, size = 0x1000, scoped, tag = 'input window, operand 0, single buffered']
    #allocation3 [shape = 's32[1]{0}', space=sflag, size = 0x4, scoped, tag = 'scoped memory for tpu_custom_call.1']
    #allocation4 [shape = 's32[1]{0}', space=sflag, size = 0x4, scoped, tag = 'scoped memory for tpu_custom_call.1']
    #allocation5 [shape = 'u8[196608]{0}', space=vmem, size = 0x30000, scoped, tag = 'input window, operand 1, single buffered']
    #allocation6 [shape = 's32[1]{0}', space=sflag, size = 0x4, scoped, tag = 'scoped memory for tpu_custom_call.1']
    #allocation7 [shape = 'u8[4096]{0}', space=vmem, size = 0x1000, scoped, tag = 'output window, operand 0, single buffered']
    %8 = vsyncpa [#allocation3], 0
    %9 = vsyncpa [#allocation6], 0
    %10 = vsyncpa [#allocation4], 0
    // Predicated region
    $region2: #{tpu_custom_call.1} parent=1 // pred_check
      _
    $region3: #{tpu_custom_call.1} parent=1 // pred_check_branch
      %12 = sbr.rel (0) target = $region5
    $region4: #{tpu_custom_call.1} parent=1 // pred_region
      %s14 = ssub.s32 128, 128
      %15 = vsyncadd [#allocation3], %s14
      %s17 = sshll.u32 [#allocation2], 4
      %s18 = int_to_ptr.vmem [resolvable:$true] %s17
      %20 = dma.hbm_to_vmem [thread:$0]  %s0, 128, %s18, [#allocation3]
    $region5: #{tpu_custom_call.1} parent=1 // pred_fallthru
      _
    // Predicated region
    $region6: #{tpu_custom_call.1} parent=1 // pred_check
      _
    $region7: #{tpu_custom_call.1} parent=1 // pred_check_branch
      %22 = sbr.rel (0) target = $region9
    $region8: #{tpu_custom_call.1} parent=1 // pred_region
      %s24 = ssub.s32 6144, 6144
      %25 = vsyncadd [#allocation6], %s24
      %s26 = sshll.u32 [#allocation5], 4
      %s27 = int_to_ptr.vmem [resolvable:$true] %s26
      %32 = dma.hbm_to_vmem [thread:$0]  %s1, 6144, %s27, [#allocation6], 128, 128, 8
    $region9: #{tpu_custom_call.1} parent=1 // pred_fallthru
      _
    // Predicated region
    $region10: #{tpu_custom_call.1} parent=1 // pred_check
      _
    $region11: #{tpu_custom_call.1} parent=1 // pred_check_branch
      %34 = sbr.rel (0) target = $region13
    $region12: #{tpu_custom_call.1} parent=1 // pred_region
      _
    $region13: #{tpu_custom_call.1} parent=1 // pred_fallthru
      _
    // Predicated region
    $region14: #{tpu_custom_call.1} parent=1 // pred_check
      _
    $region15: #{tpu_custom_call.1} parent=1 // pred_check_branch
      %36 = sbr.rel (0) target = $region17
    $region16: #{tpu_custom_call.1} parent=1 // pred_region
      %37 = dma.done [#allocation3], 128
    $region17: #{tpu_custom_call.1} parent=1 // pred_fallthru
      _
    // Predicated region
    $region18: #{tpu_custom_call.1} parent=1 // pred_check
      _
    $region19: #{tpu_custom_call.1} parent=1 // pred_check_branch
      %39 = sbr.rel (0) target = $region21
    $region20: #{tpu_custom_call.1} parent=1 // pred_region
      %40 = dma.done [#allocation6], 6144
    $region21: #{tpu_custom_call.1} parent=1 // pred_fallthru
      _
    %v41 = vld [vmem:[#allocation2] sm:$0xff]
    %v42 = vld [vmem:[#allocation5] sm:$0xff]
    %v43 = vld [vmem:[#allocation5 + $0x8] sm:$0xff]
    %v44 = vld [vmem:[#allocation5 + $0x10] sm:$0xff]
    %v45 = vld [vmem:[#allocation5 + $0x18] sm:$0xff]
    %v46 = vld [vmem:[#allocation5 + $0x20] sm:$0xff]
    %v47 = vld [vmem:[#allocation5 + $0x28] sm:$0xff]
    %v48 = vld [vmem:[#allocation5 + $0x30] sm:$0xff]
    %v49 = vld [vmem:[#allocation5 + $0x38] sm:$0xff]
    %v50 = vld [vmem:[#allocation5 + $0x40] sm:$0xff]
    %v51 = vld [vmem:[#allocation5 + $0x48] sm:$0xff]
    %v52 = vld [vmem:[#allocation5 + $0x50] sm:$0xff]
    %v53 = vld [vmem:[#allocation5 + $0x58] sm:$0xff]
    %v54 = vld [vmem:[#allocation5 + $0x60] sm:$0xff]
    %v55 = vld [vmem:[#allocation5 + $0x68] sm:$0xff]
    %v56 = vld [vmem:[#allocation5 + $0x70] sm:$0xff]
    %v57 = vld [vmem:[#allocation5 + $0x78] sm:$0xff]
    %v58 = vld [vmem:[%s2] sm:$0x1]
    %v60 = vlaneseq
    %v61 = vshrl.u32 %v60, 7
    %v62 = vsub.s32 0, %v61
    %v63 = vrot.slane %v58, %v62
    %65 = vmatprep.subr.mxu0 0.0
    %66 = vmatpush1.msra.mxu0 %v42
    %67 = vmatprep.subr.mxu0 0.0
    %68 = vmatpush1.msra.mxu0 %v43
    %69 = vmatprep.subr.mxu0 0.0
    %70 = vmatpush1.msra.mxu0 %v44
    %71 = vmatprep.subr.mxu0 0.0
    %72 = vmatpush1.msra.mxu0 %v45
    %73 = vmatprep.subr.mxu0 0.0
    %74 = vmatpush1.msra.mxu0 %v46
    %75 = vmatprep.subr.mxu0 0.0
    %76 = vmatpush1.msra.mxu0 %v47
    %77 = vmatprep.subr.mxu0 0.0
    %78 = vmatpush1.msra.mxu0 %v48
    %79 = vmatprep.subr.mxu0 0.0
    %80 = vmatpush1.msra.mxu0 %v49
    %81 = vmatprep.subr.mxu0 0.0
    %82 = vmatpush1.msra.mxu0 %v50
    %83 = vmatprep.subr.mxu0 0.0
    %84 = vmatpush1.msra.mxu0 %v51
    %85 = vmatprep.subr.mxu0 0.0
    %86 = vmatpush1.msra.mxu0 %v52
    %87 = vmatprep.subr.mxu0 0.0
    %88 = vmatpush1.msra.mxu0 %v53
    %89 = vmatprep.subr.mxu0 0.0
    %90 = vmatpush1.msra.mxu0 %v54
    %91 = vmatprep.subr.mxu0 0.0
    %92 = vmatpush1.msra.mxu0 %v55
    %93 = vmatprep.subr.mxu0 0.0
    %94 = vmatpush1.msra.mxu0 %v56
    %95 = vmatprep.subr.mxu0 0.0
    %96 = vmatpush1.msra.mxu0 %v57
    %97 = vmatprep.subr.mxu0 0.0
    %98 = vmatpush1.msra.mxu0 0.0
    %99 = vmatprep.subr.mxu0 0.0
    %100 = vmatpush1.msra.mxu0 0.0
    %101 = vmatprep.subr.mxu0 0.0
    %102 = vmatpush1.msra.mxu0 0.0
    %103 = vmatprep.subr.mxu0 0.0
    %104 = vmatpush1.msra.mxu0 0.0
    %105 = vmatprep.subr.mxu0 0.0
    %106 = vmatpush1.msra.mxu0 0.0
    %107 = vmatprep.subr.mxu0 0.0
    %108 = vmatpush1.msra.mxu0 0.0
    %109 = vmatprep.subr.mxu0 0.0
    %110 = vmatpush1.msra.mxu0 0.0
    %111 = vmatprep.subr.mxu0 0.0
    %112 = vmatpush1.msra.mxu0 0.0
    %113 = vmatprep.subr.mxu0 0.0
    %114 = vmatpush1.msra.mxu0 0.0
    %115 = vmatprep.subr.mxu0 0.0
    %116 = vmatpush1.msra.mxu0 0.0
    %117 = vmatprep.subr.mxu0 0.0
    %118 = vmatpush1.msra.mxu0 0.0
    %119 = vmatprep.subr.mxu0 0.0
    %120 = vmatpush1.msra.mxu0 0.0
    %121 = vmatprep.subr.mxu0 0.0
    %122 = vmatpush1.msra.mxu0 0.0
    %123 = vmatprep.subr.mxu0 0.0
    %124 = vmatpush1.msra.mxu0 0.0
    %125 = vmatprep.subr.mxu0 0.0
    %126 = vmatpush1.msra.mxu0 0.0
    %127 = vmatprep.subr.mxu0 0.0
    %128 = vmatpush1.msra.mxu0 0.0
    %129 = vmatprep.mubr.f32.mxu0 0.0
    %130 = vmatmul.mubr.f32.gmra.mrb[0].mxu0 %v41
    %v131 = vpop.f32.mrb[0].mxu0
    %v132 = vadd.f32 %v63, %v131
    %v133 = vpop.f32.mrb[0].mxu0
    %134 = vdwg.mxu0
    %vm135 = vcmp.ge.f32.partialorder %v132, 0.0
    %v136 = vmul.f32 %v132, 0.01
    %v137 = vsel %vm135, %v132, %v136
    %s138 = scalar_lea.vmem [#allocation5], 128
    %v139 = vld [vmem:[%s138] sm:$0xff]
    %v140 = vld [vmem:[%s138 + $0x8] sm:$0xff]
    %v141 = vld [vmem:[%s138 + $0x10] sm:$0xff]
    %v142 = vld [vmem:[%s138 + $0x18] sm:$0xff]
    %v143 = vld [vmem:[%s138 + $0x20] sm:$0xff]
    %v144 = vld [vmem:[%s138 + $0x28] sm:$0xff]
    %v145 = vld [vmem:[%s138 + $0x30] sm:$0xff]
    %v146 = vld [vmem:[%s138 + $0x38] sm:$0xff]
    %v147 = vld [vmem:[%s138 + $0x40] sm:$0xff]
    %v148 = vld [vmem:[%s138 + $0x48] sm:$0xff]
    %v149 = vld [vmem:[%s138 + $0x50] sm:$0xff]
    %v150 = vld [vmem:[%s138 + $0x58] sm:$0xff]
    %v151 = vld [vmem:[%s138 + $0x60] sm:$0xff]
    %v152 = vld [vmem:[%s138 + $0x68] sm:$0xff]
    %v153 = vld [vmem:[%s138 + $0x70] sm:$0xff]
    %v154 = vld [vmem:[%s138 + $0x78] sm:$0xff]
    %s155 = scalar_lea.vmem %s2, 1
    %v156 = vld [vmem:[%s155] sm:$0x1]
    %v158 = vlaneseq
    %v159 = vshrl.u32 %v158, 7
    %v160 = vsub.s32 0, %v159
    %v161 = vrot.slane %v156, %v160
    %163 = vmatprep.subr.mxu0 0.0
    %164 = vmatpush1.msra.mxu0 %v139
    %165 = vmatprep.subr.mxu0 0.0
    %166 = vmatpush1.msra.mxu0 %v140
    %167 = vmatprep.subr.mxu0 0.0
    %168 = vmatpush1.msra.mxu0 %v141
    %169 = vmatprep.subr.mxu0 0.0
    %170 = vmatpush1.msra.mxu0 %v142
    %171 = vmatprep.subr.mxu0 0.0
    %172 = vmatpush1.msra.mxu0 %v143
    %173 = vmatprep.subr.mxu0 0.0
    %174 = vmatpush1.msra.mxu0 %v144
    %175 = vmatprep.subr.mxu0 0.0
    %176 = vmatpush1.msra.mxu0 %v145
    %177 = vmatprep.subr.mxu0 0.0
    %178 = vmatpush1.msra.mxu0 %v146
    %179 = vmatprep.subr.mxu0 0.0
    %180 = vmatpush1.msra.mxu0 %v147
    %181 = vmatprep.subr.mxu0 0.0
    %182 = vmatpush1.msra.mxu0 %v148
    %183 = vmatprep.subr.mxu0 0.0
    %184 = vmatpush1.msra.mxu0 %v149
    %185 = vmatprep.subr.mxu0 0.0
    %186 = vmatpush1.msra.mxu0 %v150
    %187 = vmatprep.subr.mxu0 0.0
    %188 = vmatpush1.msra.mxu0 %v151
    %189 = vmatprep.subr.mxu0 0.0
    %190 = vmatpush1.msra.mxu0 %v152
    %191 = vmatprep.subr.mxu0 0.0
    %192 = vmatpush1.msra.mxu0 %v153
    %193 = vmatprep.subr.mxu0 0.0
    %194 = vmatpush1.msra.mxu0 %v154
    %195 = vmatprep.subr.mxu0 0.0
    %196 = vmatpush1.msra.mxu0 0.0
    %197 = vmatprep.subr.mxu0 0.0
    %198 = vmatpush1.msra.mxu0 0.0
    %199 = vmatprep.subr.mxu0 0.0
    %200 = vmatpush1.msra.mxu0 0.0
    %201 = vmatprep.subr.mxu0 0.0
    %202 = vmatpush1.msra.mxu0 0.0
    %203 = vmatprep.subr.mxu0 0.0
    %204 = vmatpush1.msra.mxu0 0.0
    %205 = vmatprep.subr.mxu0 0.0
    %206 = vmatpush1.msra.mxu0 0.0
    %207 = vmatprep.subr.mxu0 0.0
    %208 = vmatpush1.msra.mxu0 0.0
    %209 = vmatprep.subr.mxu0 0.0
    %210 = vmatpush1.msra.mxu0 0.0
    %211 = vmatprep.subr.mxu0 0.0
    %212 = vmatpush1.msra.mxu0 0.0
    %213 = vmatprep.subr.mxu0 0.0
    %214 = vmatpush1.msra.mxu0 0.0
    %215 = vmatprep.subr.mxu0 0.0
    %216 = vmatpush1.msra.mxu0 0.0
    %217 = vmatprep.subr.mxu0 0.0
    %218 = vmatpush1.msra.mxu0 0.0
    %219 = vmatprep.subr.mxu0 0.0
    %220 = vmatpush1.msra.mxu0 0.0
    %221 = vmatprep.subr.mxu0 0.0
    %222 = vmatpush1.msra.mxu0 0.0
    %223 = vmatprep.subr.mxu0 0.0
    %224 = vmatpush1.msra.mxu0 0.0
    %225 = vmatprep.subr.mxu0 0.0
    %226 = vmatpush1.msra.mxu0 0.0
    %227 = vmatprep.mubr.f32.mxu0 0.0
    %228 = vmatmul.mubr.f32.gmra.mrb[0].mxu0 %v137
    %v229 = vpop.f32.mrb[0].mxu0
    %v230 = vadd.f32 %v161, %v229
    %v231 = vpop.f32.mrb[0].mxu0
    %232 = vdwg.mxu0
    %vm233 = vcmp.ge.f32.partialorder %v230, 0.0
    %v234 = vmul.f32 %v230, 0.01
    %v235 = vsel %vm233, %v230, %v234
    %s236 = scalar_lea.vmem [#allocation5], 256
    %v237 = vld [vmem:[%s236] sm:$0xff]
    %v238 = vld [vmem:[%s236 + $0x8] sm:$0xff]
    %v239 = vld [vmem:[%s236 + $0x10] sm:$0xff]
    %v240 = vld [vmem:[%s236 + $0x18] sm:$0xff]
    %v241 = vld [vmem:[%s236 + $0x20] sm:$0xff]
    %v242 = vld [vmem:[%s236 + $0x28] sm:$0xff]
    %v243 = vld [vmem:[%s236 + $0x30] sm:$0xff]
    %v244 = vld [vmem:[%s236 + $0x38] sm:$0xff]
    %v245 = vld [vmem:[%s236 + $0x40] sm:$0xff]
    %v246 = vld [vmem:[%s236 + $0x48] sm:$0xff]
    %v247 = vld [vmem:[%s236 + $0x50] sm:$0xff]
    %v248 = vld [vmem:[%s236 + $0x58] sm:$0xff]
    %v249 = vld [vmem:[%s236 + $0x60] sm:$0xff]
    %v250 = vld [vmem:[%s236 + $0x68] sm:$0xff]
    %v251 = vld [vmem:[%s236 + $0x70] sm:$0xff]
    %v252 = vld [vmem:[%s236 + $0x78] sm:$0xff]
    %s253 = scalar_lea.vmem %s2, 2
    %v254 = vld [vmem:[%s253] sm:$0x1]
    %v256 = vlaneseq
    %v257 = vshrl.u32 %v256, 7
    %v258 = vsub.s32 0, %v257
    %v259 = vrot.slane %v254, %v258
    %261 = vmatprep.subr.mxu0 0.0
    %262 = vmatpush1.msra.mxu0 %v237
    %263 = vmatprep.subr.mxu0 0.0
    %264 = vmatpush1.msra.mxu0 %v238
    %265 = vmatprep.subr.mxu0 0.0
    %266 = vmatpush1.msra.mxu0 %v239
    %267 = vmatprep.subr.mxu0 0.0
    %268 = vmatpush1.msra.mxu0 %v240
    %269 = vmatprep.subr.mxu0 0.0
    %270 = vmatpush1.msra.mxu0 %v241
    %271 = vmatprep.subr.mxu0 0.0
    %272 = vmatpush1.msra.mxu0 %v242
    %273 = vmatprep.subr.mxu0 0.0
    %274 = vmatpush1.msra.mxu0 %v243
    %275 = vmatprep.subr.mxu0 0.0
    %276 = vmatpush1.msra.mxu0 %v244
    %277 = vmatprep.subr.mxu0 0.0
    %278 = vmatpush1.msra.mxu0 %v245
    %279 = vmatprep.subr.mxu0 0.0
    %280 = vmatpush1.msra.mxu0 %v246
    %281 = vmatprep.subr.mxu0 0.0
    %282 = vmatpush1.msra.mxu0 %v247
    %283 = vmatprep.subr.mxu0 0.0
    %284 = vmatpush1.msra.mxu0 %v248
    %285 = vmatprep.subr.mxu0 0.0
    %286 = vmatpush1.msra.mxu0 %v249
    %287 = vmatprep.subr.mxu0 0.0
    %288 = vmatpush1.msra.mxu0 %v250
    %289 = vmatprep.subr.mxu0 0.0
    %290 = vmatpush1.msra.mxu0 %v251
    %291 = vmatprep.subr.mxu0 0.0
    %292 = vmatpush1.msra.mxu0 %v252
    %293 = vmatprep.subr.mxu0 0.0
    %294 = vmatpush1.msra.mxu0 0.0
    %295 = vmatprep.subr.mxu0 0.0
    %296 = vmatpush1.msra.mxu0 0.0
    %297 = vmatprep.subr.mxu0 0.0
    %298 = vmatpush1.msra.mxu0 0.0
    %299 = vmatprep.subr.mxu0 0.0
    %300 = vmatpush1.msra.mxu0 0.0
    %301 = vmatprep.subr.mxu0 0.0
    %302 = vmatpush1.msra.mxu0 0.0
    %303 = vmatprep.subr.mxu0 0.0
    %304 = vmatpush1.msra.mxu0 0.0
    %305 = vmatprep.subr.mxu0 0.0
    %306 = vmatpush1.msra.mxu0 0.0
    %307 = vmatprep.subr.mxu0 0.0
    %308 = vmatpush1.msra.mxu0 0.0
    %309 = vmatprep.subr.mxu0 0.0
    %310 = vmatpush1.msra.mxu0 0.0
    %311 = vmatprep.subr.mxu0 0.0
    %312 = vmatpush1.msra.mxu0 0.0
    %313 = vmatprep.subr.mxu0 0.0
    %314 = vmatpush1.msra.mxu0 0.0
    %315 = vmatprep.subr.mxu0 0.0
    %316 = vmatpush1.msra.mxu0 0.0
    %317 = vmatprep.subr.mxu0 0.0
    %318 = vmatpush1.msra.mxu0 0.0
    %319 = vmatprep.subr.mxu0 0.0
    %320 = vmatpush1.msra.mxu0 0.0
    %321 = vmatprep.subr.mxu0 0.0
    %322 = vmatpush1.msra.mxu0 0.0
    %323 = vmatprep.subr.mxu0 0.0
    %324 = vmatpush1.msra.mxu0 0.0
    %325 = vmatprep.mubr.f32.mxu0 0.0
    %326 = vmatmul.mubr.f32.gmra.mrb[0].mxu0 %v235
    %v327 = vpop.f32.mrb[0].mxu0
    %v328 = vadd.f32 %v259, %v327
    %v329 = vpop.f32.mrb[0].mxu0
    %330 = vdwg.mxu0
    %331 = vst [vmem:[#allocation7] sm:$0xff] %v328
    // Predicated region
    $region22: #{tpu_custom_call.1} parent=1 // pred_check
      _
    $region23: #{tpu_custom_call.1} parent=1 // pred_check_branch
      %333 = sbr.rel (0) target = $region25
    $region24: #{tpu_custom_call.1} parent=1 // pred_region
      %s335 = ssub.s32 128, 128
      %336 = vsyncadd [#allocation4], %s335
      %s338 = sshll.u32 [#allocation7], 4
      %s339 = int_to_ptr.vmem [resolvable:$true] %s338
      %341 = dma.vmem_to_hbm [thread:$0]  %s339, 128, %s3, [#allocation4]
    $region25: #{tpu_custom_call.1} parent=1 // pred_fallthru
      _
    // Predicated region
    $region26: #{tpu_custom_call.1} parent=1 // pred_check
      _
    $region27: #{tpu_custom_call.1} parent=1 // pred_check_branch
      %343 = sbr.rel (0) target = $region29
    $region28: #{tpu_custom_call.1} parent=1 // pred_region
      %344 = dma.done [#allocation4], 128
    $region29: #{tpu_custom_call.1} parent=1 // pred_fallthru
      _
    %345 = vsyncpa [#allocation3], 1
    %346 = vsyncpa [#allocation6], 1
    %347 = vsyncpa [#allocation4], 1

</llo_original>
